<compile_context>
chip_gen: v7x
topology: tpu7x:2x2x1
jax: 0.10.0
libtpu: 0.0.40
codegen_flags: <defaults>
</compile_context>

<pallas_src>
import functools

import jax
import jax.numpy as jnp
from jax.experimental import pallas as pl
from jax.experimental.pallas import tpu as pltpu


def _pick_spatial_tile(S, C, itemsize=4, target_bytes=2 << 20):
    """Largest divisor of S whose (C, TS) block stays under target_bytes,
    preferring lane-dense tiles (multiples of 128), then sublane-aligned (8)."""
    cap = max(1, target_bytes // max(1, C * itemsize))
    if S <= cap:
        return S
    divs = [d for d in range(1, min(S, cap) + 1) if S % d == 0]
    for align in (128, 8, 1):
        aligned = [d for d in divs if d % align == 0]
        if aligned:
            return max(aligned)
    return S


def _gate_kernel(x_ref, w0_ref, c0_ref, w1_ref, b1_ref, g_ref, acc_ref, *, inv_area):
    # x_ref : (1, C, TS)   channels on sublanes, spatial on lanes
    # w0_ref: (Cr, C)  c0_ref: (Cr, 1)  w1_ref: (C, Cr)  b1_ref: (C, 1)
    # g_ref : (1, C, 1)    acc_ref: (C, 1) f32 scratch (partial spatial sum)
    s = pl.program_id(1)

    @pl.when(s == 0)
    def _init():
        acc_ref[...] = jnp.zeros_like(acc_ref)

    # Partial global-average-pool sum for this spatial tile (lane reduction).
    acc_ref[...] += jnp.sum(x_ref[0].astype(jnp.float32), axis=-1, keepdims=True)

    @pl.when(s == pl.num_programs(1) - 1)
    def _finalize():
        avg = acc_ref[...] * inv_area                                      # (C, 1)
        # gate_c MLP (BatchNorm already folded into w0/c0 in the wrapper).
        h = jnp.dot(w0_ref[...], avg, preferred_element_type=jnp.float32)  # (Cr, 1)
        h = jnp.maximum(h + c0_ref[...], 0.0)
        g = jnp.dot(w1_ref[...], h, preferred_element_type=jnp.float32)    # (C, 1)
        g_ref[0] = g + b1_ref[...]


def _expand_kernel(g_ref, o_ref):
    # g_ref: (1, C, 1)   o_ref: (1, C, TS) — lane-dense unmasked stores when TS % 128 == 0
    o_ref[0] = jnp.broadcast_to(g_ref[0], o_ref.shape[1:]).astype(o_ref.dtype)


def channel_gate(x, params, *, bn_eps=1e-5):
    """x: (B, C, H, W).  params: gate_c parameters in PyTorch layout.
    Returns the gate expanded to x.shape (no sigmoid — matches the module)."""
    B, C, H, W = x.shape
    assert H == W, "avg_pool2d(kernel=H, stride=H) in the module assumes square input"
    S = H * W
    Cr = params["w0"].shape[0]

    # ---- fold eval-mode BatchNorm1d into the first Linear (exact algebra) ----
    scale = params["bn_w"] / jnp.sqrt(params["bn_var"] + bn_eps)           # (Cr,)
    w0f = (params["w0"] * scale[:, None]).astype(jnp.float32)              # (Cr, C)
    c0 = (scale * (params["b0"] - params["bn_mean"]) + params["bn_b"])     # (Cr,)
    c0c = c0.reshape(Cr, 1).astype(jnp.float32)
    w1 = params["w1"].astype(jnp.float32)                                  # (C, Cr)
    b1c = params["b1"].reshape(C, 1).astype(jnp.float32)                   # (C, 1)

    xs = x.reshape(B, C, S)                  # free reshape; spatial axis is lane-dense
    TS = _pick_spatial_tile(S, C, itemsize=x.dtype.itemsize)
    n_s = S // TS

    # ---- kernel 1: pooled-average reduction + fused gate MLP epilogue ----
    gate = pl.pallas_call(
        functools.partial(_gate_kernel, inv_area=1.0 / S),
        out_shape=jax.ShapeDtypeStruct((B, C, 1), jnp.float32),
        grid_spec=pltpu.PrefetchScalarGridSpec(
            num_scalar_prefetch=0,
            grid=(B, n_s),
            in_specs=[
                pl.BlockSpec((1, C, TS), lambda b, s: (b, 0, s)),
                pl.BlockSpec((Cr, C), lambda b, s: (0, 0)),
                pl.BlockSpec((Cr, 1), lambda b, s: (0, 0)),
                pl.BlockSpec((C, Cr), lambda b, s: (0, 0)),
                pl.BlockSpec((C, 1), lambda b, s: (0, 0)),
            ],
            out_specs=pl.BlockSpec((1, C, 1), lambda b, s: (b, 0, 0)),
            scratch_shapes=[pltpu.VMEM((C, 1), jnp.float32)],
        ),
        compiler_params=pltpu.CompilerParams(
            dimension_semantics=("parallel", "arbitrary")),
    )(xs, w0f, c0c, w1, b1c)

    # ---- kernel 2: broadcast-expand of the gate over the spatial axis ----
    out = pl.pallas_call(
        _expand_kernel,
        out_shape=jax.ShapeDtypeStruct((B, C, S), x.dtype),
        grid_spec=pltpu.PrefetchScalarGridSpec(
            num_scalar_prefetch=0,
            grid=(B, n_s),
            in_specs=[pl.BlockSpec((1, C, 1), lambda b, s: (b, 0, 0))],
            out_specs=pl.BlockSpec((1, C, TS), lambda b, s: (b, 0, s)),
        ),
        compiler_params=pltpu.CompilerParams(
            dimension_semantics=("parallel", "parallel")),
    )(gate)

    return out.reshape(B, C, H, W)


def reference(x, params, bn_eps=1e-5):
    """Pure-JAX reference of the PyTorch forward (eval-mode BatchNorm)."""
    B, C, H, W = x.shape
    avg = jnp.mean(x.reshape(B, C, H * W), axis=-1)                        # (B, C)
    h = avg @ params["w0"].T + params["b0"]
    h = (h - params["bn_mean"]) / jnp.sqrt(params["bn_var"] + bn_eps)
    h = h * params["bn_w"] + params["bn_b"]
    h = jnp.maximum(h, 0.0)
    g = h @ params["w1"].T + params["b1"]
    return jnp.broadcast_to(g[:, :, None, None], x.shape)


if __name__ == "__main__":
    # gate_channel=64, reduction_ratio=16, num_layers=1 -> hidden Cr=4
    B, C, H, W = 2, 64, 16, 16
    reduction_ratio = 16
    Cr = C // reduction_ratio

    key = jax.random.PRNGKey(0)
    kx, k0, kb0, k1, kb1, kbw, kbb, kbm, kbv = jax.random.split(key, 9)

    x = jax.random.normal(kx, (B, C, H, W), dtype=jnp.float32)

    lim0 = 1.0 / (C ** 0.5)
    lim1 = 1.0 / (Cr ** 0.5)
    params = {
        # gate_c_fc_0: Linear(C, Cr), PyTorch weight layout (out, in)
        "w0": jax.random.uniform(k0, (Cr, C), jnp.float32, -lim0, lim0),
        "b0": jax.random.uniform(kb0, (Cr,), jnp.float32, -lim0, lim0),
        # gate_c_bn_1: BatchNorm1d(Cr), eval-mode running statistics
        "bn_w": jax.random.uniform(kbw, (Cr,), jnp.float32, 0.5, 1.5),
        "bn_b": 0.1 * jax.random.normal(kbb, (Cr,), jnp.float32),
        "bn_mean": 0.1 * jax.random.normal(kbm, (Cr,), jnp.float32),
        "bn_var": jax.random.uniform(kbv, (Cr,), jnp.float32, 0.5, 1.5),
        # gate_c_fc_final: Linear(Cr, C)
        "w1": jax.random.uniform(k1, (C, Cr), jnp.float32, -lim1, lim1),
        "b1": jax.random.uniform(kb1, (C,), jnp.float32, -lim1, lim1),
    }

    out = channel_gate(x, params)
    out = jax.block_until_ready(out)

    ref = reference(x, params)
    assert out.shape == x.shape
    assert jnp.allclose(out, ref, atol=1e-4, rtol=1e-4), float(jnp.max(jnp.abs(out - ref)))

    print("KERNEL_OK")
</pallas_src>

<mosaic_0001>
module attributes {stable_mosaic.version = 11 : i64} {
  func.func @_gate_kernel(%arg0: i32, %arg1: i32, %arg2: memref<1x64x256xf32, #tpu.memory_space<vmem>>, %arg3: memref<4x64xf32, #tpu.memory_space<vmem>>, %arg4: memref<4x1xf32, #tpu.memory_space<vmem>>, %arg5: memref<64x4xf32, #tpu.memory_space<vmem>>, %arg6: memref<64x1xf32, #tpu.memory_space<vmem>>, %arg7: memref<1x64x1xf32, #tpu.memory_space<vmem>>, %arg8: memref<64x1xf32, #tpu.memory_space<vmem>>) attributes {dimension_semantics = [#tpu.dimension_semantics<parallel>, #tpu.dimension_semantics<arbitrary>], iteration_bounds = array<i64: 2, 1>, scalar_prefetch = 0 : i64, scratch_operands = 1 : i64, tpu.core_type = #tpu.core_type<tc>, window_params = [{transform_indices = @transform_0, window_bounds = array<i64: 1, 64, 256>}, {pipeline_mode = #tpu.pipeline_mode<synchronous>, transform_indices = @transform_1, window_bounds = array<i64: 4, 64>}, {pipeline_mode = #tpu.pipeline_mode<synchronous>, transform_indices = @transform_2, window_bounds = array<i64: 4, 1>}, {pipeline_mode = #tpu.pipeline_mode<synchronous>, transform_indices = @transform_3, window_bounds = array<i64: 64, 4>}, {pipeline_mode = #tpu.pipeline_mode<synchronous>, transform_indices = @transform_4, window_bounds = array<i64: 64, 1>}, {transform_indices = @transform_5, window_bounds = array<i64: 1, 64, 1>}]} {
    %c0_i32 = arith.constant 0 : i32
    %0 = arith.cmpi eq, %arg1, %c0_i32 : i32
    %1 = arith.extui %0 : i1 to i32
    %c0_i32_0 = arith.constant 0 : i32
    %2 = arith.cmpi ne, %1, %c0_i32_0 : i32
    scf.if %2 {
      %cst_9 = arith.constant 0.000000e+00 : f32
      %13 = vector.broadcast %cst_9 : f32 to vector<64x1xf32>
      %c0_10 = arith.constant 0 : index
      %c0_11 = arith.constant 0 : index
      %14 = vector.load %arg8[%c0_10, %c0_11] : memref<64x1xf32, #tpu.memory_space<vmem>>, vector<64x1xf32>
      tpu.vector_store %arg8[%c0_10, %c0_11], %13 {strides = array<i32>} : memref<64x1xf32, #tpu.memory_space<vmem>>, vector<64x1xf32>,
    } else {
    }
    %c0 = arith.constant 0 : index
    %c0_1 = arith.constant 0 : index
    %3 = vector.load %arg8[%c0, %c0_1] : memref<64x1xf32, #tpu.memory_space<vmem>>, vector<64x1xf32>
    %c0_2 = arith.constant 0 : index
    %c0_3 = arith.constant 0 : index
    %c0_4 = arith.constant 0 : index
    %4 = vector.load %arg2[%c0_2, %c0_3, %c0_4] : memref<1x64x256xf32, #tpu.memory_space<vmem>>, vector<1x64x256xf32>
    %5 = vector.shape_cast %4 : vector<1x64x256xf32> to vector<64x256xf32>
    %cst = arith.constant dense<0.000000e+00> : vector<64xf32>
    %6 = vector.multi_reduction <add>, %5, %cst [1] : vector<64x256xf32> to vector<64xf32>
    %7 = vector.shape_cast %6 : vector<64xf32> to vector<64x1xf32>
    %8 = arith.addf %3, %7 : vector<64x1xf32>
    %c0_5 = arith.constant 0 : index
    %c0_6 = arith.constant 0 : index
    %9 = vector.load %arg8[%c0_5, %c0_6] : memref<64x1xf32, #tpu.memory_space<vmem>>, vector<64x1xf32>
    tpu.vector_store %arg8[%c0_5, %c0_6], %8 {strides = array<i32>} : memref<64x1xf32, #tpu.memory_space<vmem>>, vector<64x1xf32>,
    %c0_i32_7 = arith.constant 0 : i32
    %10 = arith.cmpi eq, %arg1, %c0_i32_7 : i32
    %11 = arith.extui %10 : i1 to i32
    %c0_i32_8 = arith.constant 0 : i32
    %12 = arith.cmpi ne, %11, %c0_i32_8 : i32
    scf.if %12 {
      %c0_9 = arith.constant 0 : index
      %c0_10 = arith.constant 0 : index
      %13 = vector.load %arg8[%c0_9, %c0_10] : memref<64x1xf32, #tpu.memory_space<vmem>>, vector<64x1xf32>
      %cst_11 = arith.constant 3.906250e-03 : f32
      %14 = vector.broadcast %cst_11 : f32 to vector<64x1xf32>
      %15 = arith.mulf %13, %14 : vector<64x1xf32>
      %c0_12 = arith.constant 0 : index
      %c0_13 = arith.constant 0 : index
      %16 = vector.load %arg3[%c0_12, %c0_13] : memref<4x64xf32, #tpu.memory_space<vmem>>, vector<4x64xf32>
      %cst_14 = arith.constant dense<0.000000e+00> : vector<4x1xf32>
      %17 = tpu.matmul %16, %15, %cst_14 {dimension_numbers = #tpu.dot_dimension_numbers<[1], [0], [0], [1], [0, 0, 1, 1], [], []>} : vector<4x64xf32>, vector<64x1xf32>, vector<4x1xf32> -> vector<4x1xf32>
      %c0_15 = arith.constant 0 : index
      %c0_16 = arith.constant 0 : index
      %18 = vector.load %arg4[%c0_15, %c0_16] : memref<4x1xf32, #tpu.memory_space<vmem>>, vector<4x1xf32>
      %19 = arith.addf %17, %18 : vector<4x1xf32>
      %cst_17 = arith.constant 0.000000e+00 : f32
      %20 = vector.broadcast %cst_17 : f32 to vector<4x1xf32>
      %21 = arith.maximumf %19, %20 : vector<4x1xf32>
      %c0_18 = arith.constant 0 : index
      %c0_19 = arith.constant 0 : index
      %22 = vector.load %arg5[%c0_18, %c0_19] : memref<64x4xf32, #tpu.memory_space<vmem>>, vector<64x4xf32>
      %cst_20 = arith.constant dense<0.000000e+00> : vector<64x1xf32>
      %23 = tpu.matmul %22, %21, %cst_20 {dimension_numbers = #tpu.dot_dimension_numbers<[1], [0], [0], [1], [0, 0, 1, 1], [], []>} : vector<64x4xf32>, vector<4x1xf32>, vector<64x1xf32> -> vector<64x1xf32>
      %c0_21 = arith.constant 0 : index
      %c0_22 = arith.constant 0 : index
      %24 = vector.load %arg6[%c0_21, %c0_22] : memref<64x1xf32, #tpu.memory_space<vmem>>, vector<64x1xf32>
      %25 = arith.addf %23, %24 : vector<64x1xf32>
      %c0_23 = arith.constant 0 : index
      %c0_24 = arith.constant 0 : index
      %c0_25 = arith.constant 0 : index
      %26 = vector.load %arg7[%c0_23, %c0_24, %c0_25] : memref<1x64x1xf32, #tpu.memory_space<vmem>>, vector<1x64x1xf32>
      %27 = vector.shape_cast %26 : vector<1x64x1xf32> to vector<64x1xf32>
      %28 = vector.shape_cast %25 : vector<64x1xf32> to vector<1x64x1xf32>
      tpu.vector_store %arg7[%c0_23, %c0_24, %c0_25], %28 {strides = array<i32>} : memref<1x64x1xf32, #tpu.memory_space<vmem>>, vector<1x64x1xf32>,
    } else {
    }
    return
  }
  func.func @transform_0(%arg0: i32, %arg1: i32) -> (i32, i32, i32) {
    %c0_i32 = arith.constant 0 : i32
    %c0_i32_0 = arith.constant 0 : i32
    return %arg0, %c0_i32, %arg1 : i32, i32, i32
  }
  func.func @transform_1(%arg0: i32, %arg1: i32) -> (i32, i32) {
    %c0_i32 = arith.constant 0 : i32
    %c0_i32_0 = arith.constant 0 : i32
    %c0_i32_1 = arith.constant 0 : i32
    return %c0_i32, %c0_i32_0 : i32, i32
  }
  func.func @transform_2(%arg0: i32, %arg1: i32) -> (i32, i32) {
    %c0_i32 = arith.constant 0 : i32
    %c0_i32_0 = arith.constant 0 : i32
    %c0_i32_1 = arith.constant 0 : i32
    return %c0_i32, %c0_i32_0 : i32, i32
  }
  func.func @transform_3(%arg0: i32, %arg1: i32) -> (i32, i32) {
    %c0_i32 = arith.constant 0 : i32
    %c0_i32_0 = arith.constant 0 : i32
    %c0_i32_1 = arith.constant 0 : i32
    return %c0_i32, %c0_i32_0 : i32, i32
  }
  func.func @transform_4(%arg0: i32, %arg1: i32) -> (i32, i32) {
    %c0_i32 = arith.constant 0 : i32
    %c0_i32_0 = arith.constant 0 : i32
    %c0_i32_1 = arith.constant 0 : i32
    return %c0_i32, %c0_i32_0 : i32, i32
  }
  func.func @transform_5(%arg0: i32, %arg1: i32) -> (i32, i32, i32) {
    %c0_i32 = arith.constant 0 : i32
    %c0_i32_0 = arith.constant 0 : i32
    %c0_i32_1 = arith.constant 0 : i32
    return %arg0, %c0_i32, %c0_i32_0 : i32, i32, i32
  }
}

</mosaic_0001>

<llo_original>
// kernel: tpu_custom_call.1
$region0: #{tpu_custom_call.1}
  #allocation0 [shape = 'u32[]', space=smem, size = 0x4, offset = 0x4, fixed_abs, tag = 'smem constant byte address 0x4 - core index']
  #allocation1 [shape = 'u32[144,128]{1,0:T(1,128)}', space=vmem, size = 0x12000, scoped, tag = 'internal scratch']
  #allocation2 [shape = 'f32[64,1]{1,0:T(8,128)}', space=vmem, size = 0x8000, scoped, tag = 'scratch operand']
  %s0 = inlined_call_operand.hbm [shape: f32[2,64,256], index: 0, kind: input, shape index: {}]
  %s1 = inlined_call_operand.vmem [shape: f32[4,64], index: 1, kind: input, shape index: {}]
  %s2 = inlined_call_operand.vmem [shape: f32[4,1], index: 2, kind: input, shape index: {}]
  %s3 = inlined_call_operand.vmem [shape: f32[64,4], index: 3, kind: input, shape index: {}]
  %s4 = inlined_call_operand.vmem [shape: f32[64,1], index: 4, kind: input, shape index: {}]
  %s5 = inlined_call_operand.vmem [shape: f32[2,64,1], index: 5, kind: output, shape index: {}]
  %s6 = sld [smem:[#allocation0]]
  $region65: #{tpu_custom_call.1} parent=0
    _
  %s8 = ssub.s32 1, %s6
  %s9 = scalar_select 0, %s8, %s6
  $region1: #{tpu_custom_call.1} parent=0
    #allocation3 [shape = 'u8[131072]{0}', space=vmem, size = 0x20000, scoped, tag = 'input window, operand 0']
    #allocation4 [shape = 's32[2]{0}', space=sflag, size = 0x8, scoped, tag = 'scoped memory for tpu_custom_call.1']
    %10 = vsyncpa [#allocation4], 0
    %s11 = scalar_lea.sflag [#allocation4], 1
    %12 = vsyncpa %s11, 0
    loop: start=0, step=1, limit=4
    $region2: #{tpu_custom_call.1} parent=1 // loop_pre_header
      _
    $region3: #{tpu_custom_call.1} parent=1 // loop_header
      %s14 = sphi 0, %s18
      %p15 = scmp.ge.s32.totalorder %s14, 4
      %s21 = sphi 0, %s33
      %s22 = sphi 0, %s29
      %s23 = sphi 0, %s21
      %s24 = sphi 0, %s22
      %s25 = sphi 0, %s23
      %s26 = sphi 0, %s24
      %s38 = sphi 0, %s40
      %s41 = sphi 0, %s38
      %s42 = sphi 0, %s41
      %s58 = sphi 0, %s42
      %s62 = sphi 0, %s62
      %s64 = sphi 0, %s62
      %s65 = sphi 0, %s64
      %s79 = sphi 0, %s65
      %s83 = sphi 0, %s83
      %s85 = sphi 0, %s83
      %s86 = sphi 0, %s85
      %s100 = sphi 0, %s86
      %s104 = sphi 0, %s104
      %s106 = sphi 0, %s104
      %s107 = sphi 0, %s106
      %s121 = sphi 0, %s107
      %s125 = sphi 0, %s125
      %s127 = sphi 0, %s125
      %s128 = sphi 0, %s127
      %s142 = sphi 0, %s128
      %s148 = sphi 0, %s150
      %s151 = sphi 0, %s148
      %s152 = sphi 0, %s151
      %s168 = sphi 0, %s152
    $region4: #{tpu_custom_call.1} parent=1 // loop_header_branch
      %17 = sbr.rel (%p15) target = $region8
    $region5: #{tpu_custom_call.1} parent=1 // loop_body
      %s19 = ssub.s32 %s14, 1
      %s20 = ssub.s32 %s14, 2
      %s27 = sadd.s32 1, %s22
      %p28 = scmp.ge.s32.totalorder %s27, 1
      %s29 = scalar_select %p28, 0, %s27
      %s30 = sadd.s32 1, %s21
      %s31 = scalar_select %p28, %s30, %s21
      %p32 = scmp.ge.s32.totalorder %s31, 2
      %s33 = scalar_select %p32, 0, %s31
      %s34 = ssub.s32 %s21, %s33
      %s35 = ssub.s32 %s22, %s29
      %s36 = sor.u32 %s34, %s35
      %p37 = scmp.eq.s32.totalorder %s36, 0
      %s39 = sadd.s32 %s38, 1
      %s40 = scalar_select %p37, %s38, %s39
      %p43 = pneg %p37
      %p44 = scmp.eq.s32.totalorder %s14, 1
      %p45 = por %p43, %p44
      %p46 = scmp.ne.s32.totalorder %s38, %s41
      %p47 = scmp.eq.s32.totalorder %s14, 0
      %p48 = por %p46, %p47
      %p49 = scmp.ne.s32.totalorder %s38, %s41
      %p50 = scmp.eq.s32.totalorder %s19, 1
      %p51 = por %p49, %p50
      %p52 = scmp.ne.s32.totalorder %s41, %s42
      %p53 = scmp.eq.s32.totalorder %s19, 0
      %p54 = por %p52, %p53
      %p55 = scmp.ne.s32.totalorder %s41, %s42
      %p56 = scmp.eq.s32.totalorder %s20, 1
      %p57 = por %p55, %p56
      %p59 = scmp.ne.s32.totalorder %s42, %s58
      %p60 = scmp.eq.s32.totalorder %s20, 0
      %p61 = por %p59, %p60
      %s63 = sadd.s32 %s62, 1
      %p66 = scmp.eq.s32.totalorder %s14, 1
      %p67 = scmp.ne.s32.totalorder %s62, %s64
      %p68 = scmp.eq.s32.totalorder %s14, 0
      %p69 = por %p67, %p68
      %p70 = scmp.ne.s32.totalorder %s62, %s64
      %p71 = scmp.eq.s32.totalorder %s19, 1
      %p72 = por %p70, %p71
      %p73 = scmp.ne.s32.totalorder %s64, %s65
      %p74 = scmp.eq.s32.totalorder %s19, 0
      %p75 = por %p73, %p74
      %p76 = scmp.ne.s32.totalorder %s64, %s65
      %p77 = scmp.eq.s32.totalorder %s20, 1
      %p78 = por %p76, %p77
      %p80 = scmp.ne.s32.totalorder %s65, %s79
      %p81 = scmp.eq.s32.totalorder %s20, 0
      %p82 = por %p80, %p81
      %s84 = sadd.s32 %s83, 1
      %p87 = scmp.eq.s32.totalorder %s14, 1
      %p88 = scmp.ne.s32.totalorder %s83, %s85
      %p89 = scmp.eq.s32.totalorder %s14, 0
      %p90 = por %p88, %p89
      %p91 = scmp.ne.s32.totalorder %s83, %s85
      %p92 = scmp.eq.s32.totalorder %s19, 1
      %p93 = por %p91, %p92
      %p94 = scmp.ne.s32.totalorder %s85, %s86
      %p95 = scmp.eq.s32.totalorder %s19, 0
      %p96 = por %p94, %p95
      %p97 = scmp.ne.s32.totalorder %s85, %s86
      %p98 = scmp.eq.s32.totalorder %s20, 1
      %p99 = por %p97, %p98
      %p101 = scmp.ne.s32.totalorder %s86, %s100
      %p102 = scmp.eq.s32.totalorder %s20, 0
      %p103 = por %p101, %p102
      %s105 = sadd.s32 %s104, 1
      %p108 = scmp.eq.s32.totalorder %s14, 1
      %p109 = scmp.ne.s32.totalorder %s104, %s106
      %p110 = scmp.eq.s32.totalorder %s14, 0
      %p111 = por %p109, %p110
      %p112 = scmp.ne.s32.totalorder %s104, %s106
      %p113 = scmp.eq.s32.totalorder %s19, 1
      %p114 = por %p112, %p113
      %p115 = scmp.ne.s32.totalorder %s106, %s107
      %p116 = scmp.eq.s32.totalorder %s19, 0
      %p117 = por %p115, %p116
      %p118 = scmp.ne.s32.totalorder %s106, %s107
      %p119 = scmp.eq.s32.totalorder %s20, 1
      %p120 = por %p118, %p119
      %p122 = scmp.ne.s32.totalorder %s107, %s121
      %p123 = scmp.eq.s32.totalorder %s20, 0
      %p124 = por %p122, %p123
      %s126 = sadd.s32 %s125, 1
      %p129 = scmp.eq.s32.totalorder %s14, 1
      %p130 = scmp.ne.s32.totalorder %s125, %s127
      %p131 = scmp.eq.s32.totalorder %s14, 0
      %p132 = por %p130, %p131
      %p133 = scmp.ne.s32.totalorder %s125, %s127
      %p134 = scmp.eq.s32.totalorder %s19, 1
      %p135 = por %p133, %p134
      %p136 = scmp.ne.s32.totalorder %s127, %s128
      %p137 = scmp.eq.s32.totalorder %s19, 0
      %p138 = por %p136, %p137
      %p139 = scmp.ne.s32.totalorder %s127, %s128
      %p140 = scmp.eq.s32.totalorder %s20, 1
      %p141 = por %p139, %p140
      %p143 = scmp.ne.s32.totalorder %s128, %s142
      %p144 = scmp.eq.s32.totalorder %s20, 0
      %p145 = por %p143, %p144
      %s146 = ssub.s32 %s21, %s33
      %p147 = scmp.eq.s32.totalorder %s146, 0
      %s149 = sadd.s32 %s148, 1
      %s150 = scalar_select %p147, %s148, %s149
      %p153 = pneg %p147
      %p154 = scmp.eq.s32.totalorder %s14, 1
      %p155 = por %p153, %p154
      %p156 = scmp.ne.s32.totalorder %s148, %s151
      %p157 = scmp.eq.s32.totalorder %s14, 0
      %p158 = por %p156, %p157
      %p159 = scmp.ne.s32.totalorder %s148, %s151
      %p160 = scmp.eq.s32.totalorder %s19, 1
      %p161 = por %p159, %p160
      %p162 = scmp.ne.s32.totalorder %s151, %s152
      %p163 = scmp.eq.s32.totalorder %s19, 0
      %p164 = por %p162, %p163
      %p165 = scmp.ne.s32.totalorder %s151, %s152
      %p166 = scmp.eq.s32.totalorder %s20, 1
      %p167 = por %p165, %p166
      %p169 = scmp.ne.s32.totalorder %s152, %s168
      %p170 = scmp.eq.s32.totalorder %s20, 0
      %p171 = por %p169, %p170
      %p172 = scmp.le.s32.totalorder 1, %s14
      %p173 = scmp.lt.s32.totalorder %s14, 3
      %p174 = pnand %p172, %p173
      %p175 = pneg %p174
      // Predicated region
      $region9: #{tpu_custom_call.1} parent=5 // pred_check
        _
      $region10: #{tpu_custom_call.1} parent=5 // pred_check_branch
        %177 = sbr.rel (%p174) target = $region12
      $region11: #{tpu_custom_call.1} parent=5 // pred_region
        %s178 = ssub.s32 %s14, 1
        // Predicated region
        $region13: #{tpu_custom_call.1} parent=11 // pred_check
          %p179 = pneg %p75
        $region14: #{tpu_custom_call.1} parent=11 // pred_check_branch
          %181 = sbr.rel (%p179) target = $region16
        $region15: #{tpu_custom_call.1} parent=11 // pred_region
          _
        $region16: #{tpu_custom_call.1} parent=11 // pred_fallthru
          _
        // Predicated region
        $region17: #{tpu_custom_call.1} parent=11 // pred_check
          %p182 = pneg %p96
        $region18: #{tpu_custom_call.1} parent=11 // pred_check_branch
          %184 = sbr.rel (%p182) target = $region20
        $region19: #{tpu_custom_call.1} parent=11 // pred_region
          _
        $region20: #{tpu_custom_call.1} parent=11 // pred_fallthru
          _
        // Predicated region
        $region21: #{tpu_custom_call.1} parent=11 // pred_check
          %p185 = pneg %p117
        $region22: #{tpu_custom_call.1} parent=11 // pred_check_branch
          %187 = sbr.rel (%p185) target = $region24
        $region23: #{tpu_custom_call.1} parent=11 // pred_region
          _
        $region24: #{tpu_custom_call.1} parent=11 // pred_fallthru
          _
        // Predicated region
        $region25: #{tpu_custom_call.1} parent=11 // pred_check
          %p188 = pneg %p138
        $region26: #{tpu_custom_call.1} parent=11 // pred_check_branch
          %190 = sbr.rel (%p188) target = $region28
        $region27: #{tpu_custom_call.1} parent=11 // pred_region
          _
        $region28: #{tpu_custom_call.1} parent=11 // pred_fallthru
          _
      $region12: #{tpu_custom_call.1} parent=5 // pred_fallthru
        _
      %p191 = scmp.lt.s32.totalorder %s14, 2
      // Predicated region
      $region29: #{tpu_custom_call.1} parent=5 // pred_check
        %p192 = pneg %p191
      $region30: #{tpu_custom_call.1} parent=5 // pred_check_branch
        %194 = sbr.rel (%p192) target = $region32
      $region31: #{tpu_custom_call.1} parent=5 // pred_region
        // Predicated region
        $region33: #{tpu_custom_call.1} parent=31 // pred_check
          %p195 = pneg %p48
        $region34: #{tpu_custom_call.1} parent=31 // pred_check_branch
          %197 = sbr.rel (%p195) target = $region36
        $region35: #{tpu_custom_call.1} parent=31 // pred_region
          %s198 = sand.u32 %s38, 1
          %s199 = scalar_lea.sflag [#allocation4], %s198
          %s200 = sand.u32 %s38, 1
          %s201 = smul.addr %s200, 128
          %s202 = scalar_lea.vmem [#allocation3], %s201
          %s203 = smul.u32 2, %s22
          %s205 = ssub.s32 2048, 2048
          %206 = vsyncadd %s199, %s205
          %s207 = smul.addr %s21, 16
          %s208 = sadd.s32 %s203, %s207
          %s209 = smul.addr %s208, 128
          %s210 = scalar_lea.hbm %s0, %s209
          %s211 = sshll.u32 %s202, 4
          %s212 = int_to_ptr.vmem [resolvable:$true] %s211
          %217 = dma.hbm_to_vmem [thread:$0]  %s210, 2048, %s212, %s199, 256, 256, 16
        $region36: #{tpu_custom_call.1} parent=31 // pred_fallthru
          _
      $region32: #{tpu_custom_call.1} parent=5 // pred_fallthru
        _
      %p218 = scmp.le.s32.totalorder 1, %s14
      %p219 = scmp.lt.s32.totalorder %s14, 3
      %p220 = pnand %p218, %p219
      %p221 = pneg %p220
      // Predicated region
      $region37: #{tpu_custom_call.1} parent=5 // pred_check
        _
      $region38: #{tpu_custom_call.1} parent=5 // pred_check_branch
        %223 = sbr.rel (%p220) target = $region40
      $region39: #{tpu_custom_call.1} parent=5 // pred_region
        %s224 = ssub.s32 %s14, 1
        %s225 = sand.u32 %s41, 1
        %s226 = scalar_lea.sflag [#allocation4], %s225
        %s227 = sand.u32 %s41, 1
        %s228 = smul.addr %s227, 128
        %s229 = scalar_lea.vmem [#allocation3], %s228
        // Predicated region
        $region41: #{tpu_custom_call.1} parent=39 // pred_check
          %p230 = pneg %p54
        $region42: #{tpu_custom_call.1} parent=39 // pred_check_branch
          %232 = sbr.rel (%p230) target = $region44
        $region43: #{tpu_custom_call.1} parent=39 // pred_region
          %233 = dma.done %s226, 2048
        $region44: #{tpu_custom_call.1} parent=39 // pred_fallthru
          _
        %s234 = sand.u32 %s41, 1
        %s235 = scalar_lea.sflag [#allocation4], %s234
        %s236 = sand.u32 %s41, 1
        %s237 = smul.addr %s236, 128
        %s238 = scalar_lea.vmem [#allocation3], %s237
        %p239 = pneg %p54
        %p240 = pneg %p51
        %p241 = pneg %p75
        %p242 = pneg %p72
        %p243 = pneg %p96
        %p244 = pneg %p93
        %p245 = pneg %p117
        %p246 = pneg %p114
        %p247 = pneg %p138
        %p248 = pneg %p135
        %p249 = pneg %p164
        %p250 = pneg %p161
        %p251 = scmp.lt.s32.totalorder %s23, 1
        %s252 = scalar_select %p251, %s23, 1
        %s253 = smul.addr %s252, 8
        %s254 = smul.addr %s253, 8
        %s255 = scalar_lea.vmem %s5, %s254
        %s256 = smul.u32 2, %s24
        %p257 = scmp.lt.s32.totalorder %s23, 1
        %s258 = scalar_select %p257, %s23, 1
        %s259 = smul.addr %s258, 8
        %s260 = smul.addr %s259, 8
        %s261 = scalar_lea.vmem %s5, %s260
        %p262 = scmp.eq.s32.totalorder %s24, 0
        // Predicated region
        $region45: #{tpu_custom_call.1} parent=39 // pred_check
          %p263 = pneg %p262
        $region46: #{tpu_custom_call.1} parent=39 // pred_check_branch
          %265 = sbr.rel (%p263) target = $region48
        $region47: #{tpu_custom_call.1} parent=39 // pred_region
          %vm266 = vcmask 7168
          %267 = vst.msk [vmem:[#allocation2] sm:$0xff] %vm266, 0.0
          %268 = vst.msk [vmem:[#allocation2 + $0x8] sm:$0xff] %vm266, 0.0
          %269 = vst.msk [vmem:[#allocation2 + $0x10] sm:$0xff] %vm266, 0.0
          %270 = vst.msk [vmem:[#allocation2 + $0x18] sm:$0xff] %vm266, 0.0
          %271 = vst.msk [vmem:[#allocation2 + $0x20] sm:$0xff] %vm266, 0.0
          %272 = vst.msk [vmem:[#allocation2 + $0x28] sm:$0xff] %vm266, 0.0
          %273 = vst.msk [vmem:[#allocation2 + $0x30] sm:$0xff] %vm266, 0.0
          %274 = vst.msk [vmem:[#allocation2 + $0x38] sm:$0xff] %vm266, 0.0
        $region48: #{tpu_custom_call.1} parent=39 // pred_fallthru
          _
        %v275 = vld [vmem:[#allocation2] sm:$0xff]
        %v276 = vld [vmem:[#allocation2 + $0x8] sm:$0xff]
        %v277 = vld [vmem:[#allocation2 + $0x10] sm:$0xff]
        %v278 = vld [vmem:[#allocation2 + $0x18] sm:$0xff]
        %v279 = vld [vmem:[#allocation2 + $0x20] sm:$0xff]
        %v280 = vld [vmem:[#allocation2 + $0x28] sm:$0xff]
        %v281 = vld [vmem:[#allocation2 + $0x30] sm:$0xff]
        %v282 = vld [vmem:[#allocation2 + $0x38] sm:$0xff]
        %v283 = vld [vmem:[%s229] sm:$0xff]
        %v284 = vld [vmem:[%s229 + $0x8] sm:$0xff]
        %v285 = vld [vmem:[%s229 + $0x10] sm:$0xff]
        %v286 = vld [vmem:[%s229 + $0x18] sm:$0xff]
        %v287 = vld [vmem:[%s229 + $0x20] sm:$0xff]
        %v288 = vld [vmem:[%s229 + $0x28] sm:$0xff]
        %v289 = vld [vmem:[%s229 + $0x30] sm:$0xff]
        %v290 = vld [vmem:[%s229 + $0x38] sm:$0xff]
        %v291 = vld [vmem:[%s229 + $0x40] sm:$0xff]
        %v292 = vld [vmem:[%s229 + $0x48] sm:$0xff]
        %v293 = vld [vmem:[%s229 + $0x50] sm:$0xff]
        %v294 = vld [vmem:[%s229 + $0x58] sm:$0xff]
        %v295 = vld [vmem:[%s229 + $0x60] sm:$0xff]
        %v296 = vld [vmem:[%s229 + $0x68] sm:$0xff]
        %v297 = vld [vmem:[%s229 + $0x70] sm:$0xff]
        %v298 = vld [vmem:[%s229 + $0x78] sm:$0xff]
        %v299 = vadd.f32 %v283, %v284
        %300 = vadd.xlane.f32.xlu0 %v299
        %v301 = vpop.xlane.xlu0 %300
        %v302 = vadd.f32 %v285, %v286
        %303 = vadd.xlane.f32.xlu0 %v302
        %v304 = vpop.xlane.xlu0 %303
        %v305 = vadd.f32 %v287, %v288
        %306 = vadd.xlane.f32.xlu0 %v305
        %v307 = vpop.xlane.xlu0 %306
        %v308 = vadd.f32 %v289, %v290
        %309 = vadd.xlane.f32.xlu0 %v308
        %v310 = vpop.xlane.xlu0 %309
        %v311 = vadd.f32 %v291, %v292
        %312 = vadd.xlane.f32.xlu0 %v311
        %v313 = vpop.xlane.xlu0 %312
        %v314 = vadd.f32 %v293, %v294
        %315 = vadd.xlane.f32.xlu0 %v314
        %v316 = vpop.xlane.xlu0 %315
        %v317 = vadd.f32 %v295, %v296
        %318 = vadd.xlane.f32.xlu0 %v317
        %v319 = vpop.xlane.xlu0 %318
        %v320 = vadd.f32 %v297, %v298
        %321 = vadd.xlane.f32.xlu0 %v320
        %v322 = vpop.xlane.xlu0 %321
        %v323 = vadd.f32 %v275, %v301
        %v324 = vadd.f32 %v276, %v304
        %v325 = vadd.f32 %v277, %v307
        %v326 = vadd.f32 %v278, %v310
        %v327 = vadd.f32 %v279, %v313
        %v328 = vadd.f32 %v280, %v316
        %v329 = vadd.f32 %v281, %v319
        %v330 = vadd.f32 %v282, %v322
        %vm331 = vcmask 7168
        %332 = vst.msk [vmem:[#allocation2] sm:$0xff] %vm331, %v323
        %333 = vst.msk [vmem:[#allocation2 + $0x8] sm:$0xff] %vm331, %v324
        %334 = vst.msk [vmem:[#allocation2 + $0x10] sm:$0xff] %vm331, %v325
        %335 = vst.msk [vmem:[#allocation2 + $0x18] sm:$0xff] %vm331, %v326
        %336 = vst.msk [vmem:[#allocation2 + $0x20] sm:$0xff] %vm331, %v327
        %337 = vst.msk [vmem:[#allocation2 + $0x28] sm:$0xff] %vm331, %v328
        %338 = vst.msk [vmem:[#allocation2 + $0x30] sm:$0xff] %vm331, %v329
        %339 = vst.msk [vmem:[#allocation2 + $0x38] sm:$0xff] %vm331, %v330
        // Predicated region
        $region49: #{tpu_custom_call.1} parent=39 // pred_check
          %p340 = pneg %p262
        $region50: #{tpu_custom_call.1} parent=39 // pred_check_branch
          %342 = sbr.rel (%p340) target = $region52
        $region51: #{tpu_custom_call.1} parent=39 // pred_region
          %v343 = vld [vmem:[#allocation2] sm:$0xff]
          %v344 = vld [vmem:[#allocation2 + $0x8] sm:$0xff]
          %v345 = vld [vmem:[#allocation2 + $0x10] sm:$0xff]
          %v346 = vld [vmem:[#allocation2 + $0x18] sm:$0xff]
          %v347 = vld [vmem:[#allocation2 + $0x20] sm:$0xff]
          %v348 = vld [vmem:[#allocation2 + $0x28] sm:$0xff]
          %v349 = vld [vmem:[#allocation2 + $0x30] sm:$0xff]
          %v350 = vld [vmem:[#allocation2 + $0x38] sm:$0xff]
          %v351 = vmul.f32 %v343, 0.00390625
          %v352 = vmul.f32 %v344, 0.00390625
          %v353 = vmul.f32 %v345, 0.00390625
          %v354 = vmul.f32 %v346, 0.00390625
          %v355 = vmul.f32 %v347, 0.00390625
          %v356 = vmul.f32 %v348, 0.00390625
          %v357 = vmul.f32 %v349, 0.00390625
          %v358 = vmul.f32 %v350, 0.00390625
          %v359 = vld [vmem:[%s1] sm:$0xf]
          %v360 = vld [vmem:[%s2] sm:$0xf]
          %vm361 = vcmask 523264
          %v363 = vsel %vm361, %v359, 0
          %365 = vmatprep.subr.mxu0 0.0
          %366 = vmatpush1.msra.mxu0 %v351
          %367 = vmatprep.subr.mxu0 0.0
          %368 = vmatpush1.msra.mxu0 %v352
          %369 = vmatprep.subr.mxu0 0.0
          %370 = vmatpush1.msra.mxu0 %v353
          %371 = vmatprep.subr.mxu0 0.0
          %372 = vmatpush1.msra.mxu0 %v354
          %373 = vmatprep.subr.mxu0 0.0
          %374 = vmatpush1.msra.mxu0 %v355
          %375 = vmatprep.subr.mxu0 0.0
          %376 = vmatpush1.msra.mxu0 %v356
          %377 = vmatprep.subr.mxu0 0.0
          %378 = vmatpush1.msra.mxu0 %v357
          %379 = vmatprep.subr.mxu0 0.0
          %380 = vmatpush1.msra.mxu0 %v358
          %381 = vmatprep.subr.mxu0 0.0
          %382 = vmatpush1.msra.mxu0 0.0
          %383 = vmatprep.subr.mxu0 0.0
          %384 = vmatpush1.msra.mxu0 0.0
          %385 = vmatprep.subr.mxu0 0.0
          %386 = vmatpush1.msra.mxu0 0.0
          %387 = vmatprep.subr.mxu0 0.0
          %388 = vmatpush1.msra.mxu0 0.0
          %389 = vmatprep.subr.mxu0 0.0
          %390 = vmatpush1.msra.mxu0 0.0
          %391 = vmatprep.subr.mxu0 0.0
          %392 = vmatpush1.msra.mxu0 0.0
          %393 = vmatprep.subr.mxu0 0.0
          %394 = vmatpush1.msra.mxu0 0.0
          %395 = vmatprep.subr.mxu0 0.0
          %396 = vmatpush1.msra.mxu0 0.0
          %397 = vmatprep.subr.mxu0 0.0
          %398 = vmatpush1.msra.mxu0 0.0
          %399 = vmatprep.subr.mxu0 0.0
          %400 = vmatpush1.msra.mxu0 0.0
          %401 = vmatprep.subr.mxu0 0.0
          %402 = vmatpush1.msra.mxu0 0.0
          %403 = vmatprep.subr.mxu0 0.0
          %404 = vmatpush1.msra.mxu0 0.0
          %405 = vmatprep.subr.mxu0 0.0
          %406 = vmatpush1.msra.mxu0 0.0
          %407 = vmatprep.subr.mxu0 0.0
          %408 = vmatpush1.msra.mxu0 0.0
          %409 = vmatprep.subr.mxu0 0.0
          %410 = vmatpush1.msra.mxu0 0.0
          %411 = vmatprep.subr.mxu0 0.0
          %412 = vmatpush1.msra.mxu0 0.0
          %413 = vmatprep.subr.mxu0 0.0
          %414 = vmatpush1.msra.mxu0 0.0
          %415 = vmatprep.subr.mxu0 0.0
          %416 = vmatpush1.msra.mxu0 0.0
          %417 = vmatprep.subr.mxu0 0.0
          %418 = vmatpush1.msra.mxu0 0.0
          %419 = vmatprep.subr.mxu0 0.0
          %420 = vmatpush1.msra.mxu0 0.0
          %421 = vmatprep.subr.mxu0 0.0
          %422 = vmatpush1.msra.mxu0 0.0
          %423 = vmatprep.subr.mxu0 0.0
          %424 = vmatpush1.msra.mxu0 0.0
          %425 = vmatprep.subr.mxu0 0.0
          %426 = vmatpush1.msra.mxu0 0.0
          %427 = vmatprep.subr.mxu0 0.0
          %428 = vmatpush1.msra.mxu0 0.0
          %429 = vmatprep.mubr.f32.mxu0 0.0
          %430 = vmatmul.mubr.f32.gmra.mrb[0].mxu0 %v363
          %v431 = vpop.f32.mrb[0].mxu0
          %v432 = vadd.f32 %v360, %v431
          %v433 = vpop.f32.mrb[0].mxu0
          %434 = vdwg.mxu0
          %v435 = vmax.f32 %v432, 0.0
          %v436 = vld [vmem:[%s3] sm:$0xff]
          %v437 = vld [vmem:[%s3 + $0x8] sm:$0xff]
          %v438 = vld [vmem:[%s3 + $0x10] sm:$0xff]
          %v439 = vld [vmem:[%s3 + $0x18] sm:$0xff]
          %v440 = vld [vmem:[%s3 + $0x20] sm:$0xff]
          %v441 = vld [vmem:[%s3 + $0x28] sm:$0xff]
          %v442 = vld [vmem:[%s3 + $0x30] sm:$0xff]
          %v443 = vld [vmem:[%s3 + $0x38] sm:$0xff]
          %v444 = vld [vmem:[%s4] sm:$0xff]
          %v445 = vld [vmem:[%s4 + $0x8] sm:$0xff]
          %v446 = vld [vmem:[%s4 + $0x10] sm:$0xff]
          %v447 = vld [vmem:[%s4 + $0x18] sm:$0xff]
          %v448 = vld [vmem:[%s4 + $0x20] sm:$0xff]
          %v449 = vld [vmem:[%s4 + $0x28] sm:$0xff]
          %v450 = vld [vmem:[%s4 + $0x30] sm:$0xff]
          %v451 = vld [vmem:[%s4 + $0x38] sm:$0xff]
          %vm452 = vcmask 31744
          %v454 = vsel %vm452, %v436, 0
          %v457 = vsel %vm452, %v437, 0
          %v460 = vsel %vm452, %v438, 0
          %v463 = vsel %vm452, %v439, 0
          %v466 = vsel %vm452, %v440, 0
          %v469 = vsel %vm452, %v441, 0
          %v472 = vsel %vm452, %v442, 0
          %v475 = vsel %vm452, %v443, 0
          %vm477 = vcmask 1043456
          %v479 = vsel %vm477, %v435, 0
          %481 = vmatprep.subr.mxu0 0.0
          %482 = vmatpush1.msra.mxu0 %v479
          %483 = vmatprep.subr.mxu0 0.0
          %484 = vmatpush1.msra.mxu0 0.0
          %485 = vmatprep.subr.mxu0 0.0
          %486 = vmatpush1.msra.mxu0 0.0
          %487 = vmatprep.subr.mxu0 0.0
          %488 = vmatpush1.msra.mxu0 0.0
          %489 = vmatprep.subr.mxu0 0.0
          %490 = vmatpush1.msra.mxu0 0.0
          %491 = vmatprep.subr.mxu0 0.0
          %492 = vmatpush1.msra.mxu0 0.0
          %493 = vmatprep.subr.mxu0 0.0
          %494 = vmatpush1.msra.mxu0 0.0
          %495 = vmatprep.subr.mxu0 0.0
          %496 = vmatpush1.msra.mxu0 0.0
          %497 = vmatprep.subr.mxu0 0.0
          %498 = vmatpush1.msra.mxu0 0.0
          %499 = vmatprep.subr.mxu0 0.0
          %500 = vmatpush1.msra.mxu0 0.0
          %501 = vmatprep.subr.mxu0 0.0
          %502 = vmatpush1.msra.mxu0 0.0
          %503 = vmatprep.subr.mxu0 0.0
          %504 = vmatpush1.msra.mxu0 0.0
          %505 = vmatprep.subr.mxu0 0.0
          %506 = vmatpush1.msra.mxu0 0.0
          %507 = vmatprep.subr.mxu0 0.0
          %508 = vmatpush1.msra.mxu0 0.0
          %509 = vmatprep.subr.mxu0 0.0
          %510 = vmatpush1.msra.mxu0 0.0
          %511 = vmatprep.subr.mxu0 0.0
          %512 = vmatpush1.msra.mxu0 0.0
          %513 = vmatprep.subr.mxu0 0.0
          %514 = vmatpush1.msra.mxu0 0.0
          %515 = vmatprep.subr.mxu0 0.0
          %516 = vmatpush1.msra.mxu0 0.0
          %517 = vmatprep.subr.mxu0 0.0
          %518 = vmatpush1.msra.mxu0 0.0
          %519 = vmatprep.subr.mxu0 0.0
          %520 = vmatpush1.msra.mxu0 0.0
          %521 = vmatprep.subr.mxu0 0.0
          %522 = vmatpush1.msra.mxu0 0.0
          %523 = vmatprep.subr.mxu0 0.0
          %524 = vmatpush1.msra.mxu0 0.0
          %525 = vmatprep.subr.mxu0 0.0
          %526 = vmatpush1.msra.mxu0 0.0
          %527 = vmatprep.subr.mxu0 0.0
          %528 = vmatpush1.msra.mxu0 0.0
          %529 = vmatprep.subr.mxu0 0.0
          %530 = vmatpush1.msra.mxu0 0.0
          %531 = vmatprep.subr.mxu0 0.0
          %532 = vmatpush1.msra.mxu0 0.0
          %533 = vmatprep.subr.mxu0 0.0
          %534 = vmatpush1.msra.mxu0 0.0
          %535 = vmatprep.subr.mxu0 0.0
          %536 = vmatpush1.msra.mxu0 0.0
          %537 = vmatprep.subr.mxu0 0.0
          %538 = vmatpush1.msra.mxu0 0.0
          %539 = vmatprep.subr.mxu0 0.0
          %540 = vmatpush1.msra.mxu0 0.0
          %541 = vmatprep.subr.mxu0 0.0
          %542 = vmatpush1.msra.mxu0 0.0
          %543 = vmatprep.subr.mxu0 0.0
          %544 = vmatpush1.msra.mxu0 0.0
          %545 = vmatprep.mubr.f32.mxu0 0.0
          %546 = vmatmul.mubr.f32.gmra.mrb[0].mxu0 %v454
          %v547 = vpop.f32.mrb[0].mxu0
          %v548 = vadd.f32 %v444, %v547
          %v549 = vpop.f32.mrb[0].mxu0
          %550 = vmatprep.mubr.f32.mxu0 0.0
          %551 = vmatmul.mubr.f32.gmra.mrb[0].mxu0 %v457
          %v552 = vpop.f32.mrb[0].mxu0
          %v553 = vadd.f32 %v445, %v552
          %v554 = vpop.f32.mrb[0].mxu0
          %555 = vmatprep.mubr.f32.mxu0 0.0
          %556 = vmatmul.mubr.f32.gmra.mrb[0].mxu0 %v460
          %v557 = vpop.f32.mrb[0].mxu0
          %v558 = vadd.f32 %v446, %v557
          %v559 = vpop.f32.mrb[0].mxu0
          %560 = vmatprep.mubr.f32.mxu0 0.0
          %561 = vmatmul.mubr.f32.gmra.mrb[0].mxu0 %v463
          %v562 = vpop.f32.mrb[0].mxu0
          %v563 = vadd.f32 %v447, %v562
          %v564 = vpop.f32.mrb[0].mxu0
          %565 = vmatprep.mubr.f32.mxu0 0.0
          %566 = vmatmul.mubr.f32.gmra.mrb[0].mxu0 %v466
          %v567 = vpop.f32.mrb[0].mxu0
          %v568 = vadd.f32 %v448, %v567
          %v569 = vpop.f32.mrb[0].mxu0
          %570 = vmatprep.mubr.f32.mxu0 0.0
          %571 = vmatmul.mubr.f32.gmra.mrb[0].mxu0 %v469
          %v572 = vpop.f32.mrb[0].mxu0
          %v573 = vadd.f32 %v449, %v572
          %v574 = vpop.f32.mrb[0].mxu0
          %575 = vmatprep.mubr.f32.mxu0 0.0
          %576 = vmatmul.mubr.f32.gmra.mrb[0].mxu0 %v472
          %v577 = vpop.f32.mrb[0].mxu0
          %v578 = vadd.f32 %v450, %v577
          %v579 = vpop.f32.mrb[0].mxu0
          %580 = vmatprep.mubr.f32.mxu0 0.0
          %581 = vmatmul.mubr.f32.gmra.mrb[0].mxu0 %v475
          %v582 = vpop.f32.mrb[0].mxu0
          %v583 = vadd.f32 %v451, %v582
          %v584 = vpop.f32.mrb[0].mxu0
          %585 = vdwg.mxu0
          %586 = vst.msk [vmem:[%s261] sm:$0xff] %vm331, %v548
          %587 = vst.msk [vmem:[%s261 + $0x8] sm:$0xff] %vm331, %v553
          %588 = vst.msk [vmem:[%s261 + $0x10] sm:$0xff] %vm331, %v558
          %589 = vst.msk [vmem:[%s261 + $0x18] sm:$0xff] %vm331, %v563
          %590 = vst.msk [vmem:[%s261 + $0x20] sm:$0xff] %vm331, %v568
          %591 = vst.msk [vmem:[%s261 + $0x28] sm:$0xff] %vm331, %v573
          %592 = vst.msk [vmem:[%s261 + $0x30] sm:$0xff] %vm331, %v578
          %593 = vst.msk [vmem:[%s261 + $0x38] sm:$0xff] %vm331, %v583
        $region52: #{tpu_custom_call.1} parent=39 // pred_fallthru
          _
        %p594 = scmp.lt.s32.totalorder %s23, 1
        %s595 = scalar_select %p594, %s23, 1
        %s596 = smul.addr %s595, 8
        %s597 = smul.addr %s596, 8
        %s598 = scalar_lea.vmem %s5, %s597
        // Predicated region
        $region53: #{tpu_custom_call.1} parent=39 // pred_check
          %p599 = pneg %p161
        $region54: #{tpu_custom_call.1} parent=39 // pred_check_branch
          %601 = sbr.rel (%p599) target = $region56
        $region55: #{tpu_custom_call.1} parent=39 // pred_region
          _
        $region56: #{tpu_custom_call.1} parent=39 // pred_fallthru
          _
      $region40: #{tpu_custom_call.1} parent=5 // pred_fallthru
        _
      %p602 = scmp.le.s32.totalorder 2, %s14
      // Predicated region
      $region57: #{tpu_custom_call.1} parent=5 // pred_check
        %p603 = pneg %p602
      $region58: #{tpu_custom_call.1} parent=5 // pred_check_branch
        %605 = sbr.rel (%p603) target = $region60
      $region59: #{tpu_custom_call.1} parent=5 // pred_region
        %s606 = ssub.s32 %s14, 2
        // Predicated region
        $region61: #{tpu_custom_call.1} parent=59 // pred_check
          %p607 = pneg %p167
        $region62: #{tpu_custom_call.1} parent=59 // pred_check_branch
          %609 = sbr.rel (%p607) target = $region64
        $region63: #{tpu_custom_call.1} parent=59 // pred_region
          %p610 = scmp.lt.s32.totalorder %s25, 1
          %s611 = scalar_select %p610, %s25, 1
          %s612 = smul.addr %s611, 8
          %s613 = smul.addr %s612, 8
          %s614 = scalar_lea.vmem %s5, %s613
        $region64: #{tpu_custom_call.1} parent=59 // pred_fallthru
          _
      $region60: #{tpu_custom_call.1} parent=5 // pred_fallthru
        _
    $region6: #{tpu_custom_call.1} parent=1 // loop_footer
      %s18 = sadd.s32 1, %s14
    $region7: #{tpu_custom_call.1} parent=1 // loop_footer_branch
      %13 = sbr.rel target = $region3
    $region8: #{tpu_custom_call.1} parent=1 // loop_exit
      _
    %615 = vsyncpa [#allocation4], 1
    %s616 = scalar_lea.sflag [#allocation4], 1
    %617 = vsyncpa %s616, 1

</llo_original>
